<compile_context>
chip_gen: v5e
topology: v5e:2x2
jax: 0.10.0
libtpu: 0.0.40
codegen_flags: <defaults>
</compile_context>

<pallas_src>
import functools

import jax
import jax.numpy as jnp
from jax.experimental import pallas as pl
from jax.experimental.pallas import tpu as pltpu


# ---------------------------------------------------------------------------
# NonNegativeParametrizer (compressai) re-implemented in plain JAX (glue).
# ---------------------------------------------------------------------------
REPARAM_OFFSET = 2.0 ** -18
PEDESTAL = REPARAM_OFFSET ** 2


def nonneg_init(x):
    return jnp.sqrt(jnp.maximum(x + PEDESTAL, PEDESTAL))


def nonneg_forward(x, minimum=0.0):
    bound = (float(minimum) + PEDESTAL) ** 0.5
    return jnp.maximum(x, bound) ** 2 - PEDESTAL


def _prepare_params(beta_param, gamma_param, beta_min):
    """Reparametrize beta/gamma and zero the 96 lowest-mean gamma rows."""
    C = gamma_param.shape[0]
    beta = nonneg_forward(beta_param, minimum=beta_min)        # (C,)
    gamma = nonneg_forward(gamma_param, minimum=0.0)           # (C, C)
    # GDN_v7: zero the rows of gamma whose mean is among the 96 smallest.
    # (module hard-codes 96, which requires C >= 96; min() is only defensive)
    k = min(96, C)
    _, zeroidx = jax.lax.top_k(-jnp.mean(gamma, axis=1), k)
    gamma = gamma.at[zeroidx].set(0.0)
    return beta, gamma


# ---------------------------------------------------------------------------
# Pallas kernel: one (image, lane-tile) block of the (N, C, HW) tensor.
# ---------------------------------------------------------------------------
def _gdn_v7_kernel(x_ref, gamma_ref, beta_ref, o_ref, *,
                   inverse: bool, use_bf16_matmul: bool):
    x = x_ref[0]                                   # (C, THW) fp32
    x2 = x * x
    g = gamma_ref[...]                             # (C, C)
    if use_bf16_matmul:                            # opt-in (v6e/v7x), lossy
        x2 = x2.astype(jnp.bfloat16)
        g = g.astype(jnp.bfloat16)
    # norm[o, l] = sum_c gamma[o, c] * x2[c, l]  (+ beta[o])
    norm = jnp.dot(g, x2, preferred_element_type=jnp.float32)  # (C, THW)
    norm = norm + beta_ref[...]                    # + (C, 1), lane broadcast
    if inverse:
        o_ref[0] = x * jnp.sqrt(norm)
    else:
        o_ref[0] = x * jax.lax.rsqrt(norm)


def _pick_tile_hw(HW: int, max_tile: int) -> int:
    if HW <= max_tile:
        return HW                                  # full extent always legal
    return max(128, (max_tile // 128) * 128)       # lane-dense tile


def gdn_v7_forward(x_nchw, beta_param, gamma_param, *, inverse: bool = False,
                   beta_min: float = 1e-6, max_tile_hw: int = 1024,
                   use_bf16_matmul: bool = False):
    """GDN_v7 forward.  x_nchw: (N, C, H, W) float32."""
    N, C, H, W = x_nchw.shape
    HW = H * W

    beta, gamma = _prepare_params(beta_param, gamma_param, beta_min)
    beta_c1 = beta.reshape(C, 1)

    # Native-NCHW view: contiguous reshape only, no transpose / extra HBM pass.
    x3 = x_nchw.reshape(N, C, HW)

    tile_hw = _pick_tile_hw(HW, max_tile_hw)
    grid = (N, pl.cdiv(HW, tile_hw))

    kernel = functools.partial(_gdn_v7_kernel, inverse=inverse,
                               use_bf16_matmul=use_bf16_matmul)

    out3 = pl.pallas_call(
        kernel,
        out_shape=jax.ShapeDtypeStruct((N, C, HW), jnp.float32),
        grid_spec=pltpu.PrefetchScalarGridSpec(
            num_scalar_prefetch=0,
            grid=grid,
            in_specs=[
                pl.BlockSpec((1, C, tile_hw), lambda n, t: (n, 0, t)),  # x
                pl.BlockSpec((C, C), lambda n, t: (0, 0)),              # gamma
                pl.BlockSpec((C, 1), lambda n, t: (0, 0)),              # beta
            ],
            out_specs=pl.BlockSpec((1, C, tile_hw), lambda n, t: (n, 0, t)),
        ),
        compiler_params=pltpu.CompilerParams(
            dimension_semantics=("parallel", "parallel")),
    )(x3, gamma, beta_c1)

    return out3.reshape(N, C, H, W)


# ---------------------------------------------------------------------------
# Pure-JAX reference (for correctness check).
# ---------------------------------------------------------------------------
def gdn_v7_reference(x, beta_param, gamma_param, *, inverse=False,
                     beta_min=1e-6):
    N, C, H, W = x.shape
    beta, gamma = _prepare_params(beta_param, gamma_param, beta_min)
    # F.conv2d(x**2, gamma.reshape(C,C,1,1), beta) with a 1x1 kernel:
    norm = jnp.einsum("oc,nchw->nohw", gamma, x * x) + beta.reshape(1, C, 1, 1)
    norm = jnp.sqrt(norm) if inverse else jax.lax.rsqrt(norm)
    return x * norm


if __name__ == "__main__":
    # Small shapes consistent with the module: GDN_v7 hard-codes topk(96) over
    # gamma rows, so C must be >= 96; use C = 128.
    N, C, H, W = 2, 128, 16, 16

    key = jax.random.PRNGKey(0)
    k_x, k_g = jax.random.split(key, 2)

    # Input.
    x = jax.random.normal(k_x, (N, C, H, W), dtype=jnp.float32)

    # Parameters (shapes from GDN.__init__), deterministic.  A small positive
    # perturbation is added to the eye init so the per-row means (and hence
    # the top-k row selection) are non-degenerate.
    beta_param = nonneg_init(jnp.ones((C,), dtype=jnp.float32))          # (C,)
    gamma0 = (0.1 * jnp.eye(C, dtype=jnp.float32)
              + 0.01 * jnp.abs(jax.random.normal(k_g, (C, C), jnp.float32)))
    gamma_param = nonneg_init(gamma0)                                    # (C, C)

    out = gdn_v7_forward(x, beta_param, gamma_param, inverse=False)
    out = jax.block_until_ready(out)

    ref = gdn_v7_reference(x, beta_param, gamma_param, inverse=False)
    assert out.shape == (N, C, H, W)
    assert jnp.allclose(out, ref, atol=1e-5, rtol=1e-5), "mismatch vs reference"

    print("KERNEL_OK")
</pallas_src>

<mosaic_0001>
module attributes {stable_mosaic.version = 11 : i64} {
  func.func @_gdn_v7_kernel(%arg0: i32, %arg1: i32, %arg2: memref<1x128x256xf32, #tpu.memory_space<vmem>>, %arg3: memref<128x128xf32, #tpu.memory_space<vmem>>, %arg4: memref<128x1xf32, #tpu.memory_space<vmem>>, %arg5: memref<1x128x256xf32, #tpu.memory_space<vmem>>) attributes {dimension_semantics = [#tpu.dimension_semantics<parallel>, #tpu.dimension_semantics<parallel>], iteration_bounds = array<i64: 2, 1>, scalar_prefetch = 0 : i64, scratch_operands = 0 : i64, tpu.core_type = #tpu.core_type<tc>, window_params = [{transform_indices = @transform_0, window_bounds = array<i64: 1, 128, 256>}, {pipeline_mode = #tpu.pipeline_mode<synchronous>, transform_indices = @transform_1, window_bounds = array<i64: 128, 128>}, {pipeline_mode = #tpu.pipeline_mode<synchronous>, transform_indices = @transform_2, window_bounds = array<i64: 128, 1>}, {transform_indices = @transform_3, window_bounds = array<i64: 1, 128, 256>}]} {
    %c0 = arith.constant 0 : index
    %c0_0 = arith.constant 0 : index
    %c0_1 = arith.constant 0 : index
    %0 = vector.load %arg2[%c0, %c0_0, %c0_1] : memref<1x128x256xf32, #tpu.memory_space<vmem>>, vector<1x128x256xf32>
    %1 = vector.shape_cast %0 : vector<1x128x256xf32> to vector<128x256xf32>
    %2 = arith.mulf %1, %1 : vector<128x256xf32>
    %c0_2 = arith.constant 0 : index
    %c0_3 = arith.constant 0 : index
    %3 = vector.load %arg3[%c0_2, %c0_3] : memref<128x128xf32, #tpu.memory_space<vmem>>, vector<128x128xf32>
    %cst = arith.constant dense<0.000000e+00> : vector<128x256xf32>
    %4 = tpu.matmul %3, %2, %cst {dimension_numbers = #tpu.dot_dimension_numbers<[1], [0], [0], [1], [0, 0, 1, 1], [], []>} : vector<128x128xf32>, vector<128x256xf32>, vector<128x256xf32> -> vector<128x256xf32>
    %c0_4 = arith.constant 0 : index
    %c0_5 = arith.constant 0 : index
    %5 = vector.load %arg4[%c0_4, %c0_5] : memref<128x1xf32, #tpu.memory_space<vmem>>, vector<128x1xf32>
    %6 = vector.broadcast %5 : vector<128x1xf32> to vector<128x256xf32>
    %7 = arith.addf %4, %6 : vector<128x256xf32>
    %8 = math.rsqrt %7 : vector<128x256xf32>
    %9 = arith.mulf %1, %8 : vector<128x256xf32>
    %c0_6 = arith.constant 0 : index
    %c0_7 = arith.constant 0 : index
    %c0_8 = arith.constant 0 : index
    %10 = vector.load %arg5[%c0_6, %c0_7, %c0_8] : memref<1x128x256xf32, #tpu.memory_space<vmem>>, vector<1x128x256xf32>
    %11 = vector.shape_cast %10 : vector<1x128x256xf32> to vector<128x256xf32>
    %12 = vector.shape_cast %9 : vector<128x256xf32> to vector<1x128x256xf32>
    tpu.vector_store %arg5[%c0_6, %c0_7, %c0_8], %12 {strides = array<i32>} : memref<1x128x256xf32, #tpu.memory_space<vmem>>, vector<1x128x256xf32>,
    return
  }
  func.func @transform_0(%arg0: i32, %arg1: i32) -> (i32, i32, i32) {
    %c0_i32 = arith.constant 0 : i32
    %c0_i32_0 = arith.constant 0 : i32
    return %arg0, %c0_i32, %arg1 : i32, i32, i32
  }
  func.func @transform_1(%arg0: i32, %arg1: i32) -> (i32, i32) {
    %c0_i32 = arith.constant 0 : i32
    %c0_i32_0 = arith.constant 0 : i32
    %c0_i32_1 = arith.constant 0 : i32
    return %c0_i32, %c0_i32_0 : i32, i32
  }
  func.func @transform_2(%arg0: i32, %arg1: i32) -> (i32, i32) {
    %c0_i32 = arith.constant 0 : i32
    %c0_i32_0 = arith.constant 0 : i32
    %c0_i32_1 = arith.constant 0 : i32
    return %c0_i32, %c0_i32_0 : i32, i32
  }
  func.func @transform_3(%arg0: i32, %arg1: i32) -> (i32, i32, i32) {
    %c0_i32 = arith.constant 0 : i32
    %c0_i32_0 = arith.constant 0 : i32
    return %arg0, %c0_i32, %arg1 : i32, i32, i32
  }
}

</mosaic_0001>

<llo_original>
// kernel: tpu_custom_call.1
$region0: #{tpu_custom_call.1}
  #allocation0 [shape = 'u32[]', space=smem, size = 0x4, offset = 0x4, fixed_abs, tag = 'smem constant byte address 0x4 - core index']
  #allocation1 [shape = 'u32[72,128]{1,0:T(1,128)}', space=vmem, size = 0x9000, scoped, tag = 'internal scratch']
  %s0 = inlined_call_operand.hbm [shape: f32[2,128,256], index: 0, kind: input, shape index: {}]
  %s1 = inlined_call_operand.vmem [shape: f32[128,128], index: 1, kind: input, shape index: {}]
  %s2 = inlined_call_operand.vmem [shape: f32[128,1], index: 2, kind: input, shape index: {}]
  %s3 = inlined_call_operand.hbm [shape: f32[2,128,256], index: 3, kind: output, shape index: {}]
  %s4 = sld [smem:[#allocation0]]
  $region49: #{tpu_custom_call.1} parent=0
    _
  %s6 = ssub.s32 1, %s4
  %s7 = scalar_select 0, %s6, %s4
  $region1: #{tpu_custom_call.1} parent=0
    #allocation2 [shape = 'u8[262144]{0}', space=vmem, size = 0x40000, scoped, tag = 'input window, operand 0']
    #allocation3 [shape = 's32[2]{0}', space=sflag, size = 0x8, scoped, tag = 'scoped memory for tpu_custom_call.1']
    #allocation4 [shape = 's32[2]{0}', space=sflag, size = 0x8, scoped, tag = 'scoped memory for tpu_custom_call.1']
    #allocation5 [shape = 'u8[262144]{0}', space=vmem, size = 0x40000, scoped, tag = 'output window, operand 0']
    %8 = vsyncpa [#allocation3], 0
    %s9 = scalar_lea.sflag [#allocation3], 1
    %10 = vsyncpa %s9, 0
    %11 = vsyncpa [#allocation4], 0
    %s12 = scalar_lea.sflag [#allocation4], 1
    %13 = vsyncpa %s12, 0
    loop: start=0, step=1, limit=4
    $region2: #{tpu_custom_call.1} parent=1 // loop_pre_header
      _
    $region3: #{tpu_custom_call.1} parent=1 // loop_header
      %s15 = sphi 0, %s19
      %p16 = scmp.ge.s32.totalorder %s15, 4
      %s22 = sphi 0, %s34
      %s23 = sphi 0, %s30
      %s24 = sphi 0, %s22
      %s25 = sphi 0, %s23
      %s26 = sphi 0, %s24
      %s27 = sphi 0, %s25
      %s39 = sphi 0, %s41
      %s42 = sphi 0, %s39
      %s43 = sphi 0, %s42
      %s59 = sphi 0, %s43
      %s63 = sphi 0, %s63
      %s65 = sphi 0, %s63
      %s66 = sphi 0, %s65
      %s80 = sphi 0, %s66
      %s84 = sphi 0, %s84
      %s86 = sphi 0, %s84
      %s87 = sphi 0, %s86
      %s101 = sphi 0, %s87
      %s109 = sphi 0, %s111
      %s112 = sphi 0, %s109
      %s113 = sphi 0, %s112
      %s129 = sphi 0, %s113
    $region4: #{tpu_custom_call.1} parent=1 // loop_header_branch
      %18 = sbr.rel (%p16) target = $region8
    $region5: #{tpu_custom_call.1} parent=1 // loop_body
      %s20 = ssub.s32 %s15, 1
      %s21 = ssub.s32 %s15, 2
      %s28 = sadd.s32 1, %s23
      %p29 = scmp.ge.s32.totalorder %s28, 1
      %s30 = scalar_select %p29, 0, %s28
      %s31 = sadd.s32 1, %s22
      %s32 = scalar_select %p29, %s31, %s22
      %p33 = scmp.ge.s32.totalorder %s32, 2
      %s34 = scalar_select %p33, 0, %s32
      %s35 = ssub.s32 %s22, %s34
      %s36 = ssub.s32 %s23, %s30
      %s37 = sor.u32 %s35, %s36
      %p38 = scmp.eq.s32.totalorder %s37, 0
      %s40 = sadd.s32 %s39, 1
      %s41 = scalar_select %p38, %s39, %s40
      %p44 = pneg %p38
      %p45 = scmp.eq.s32.totalorder %s15, 1
      %p46 = por %p44, %p45
      %p47 = scmp.ne.s32.totalorder %s39, %s42
      %p48 = scmp.eq.s32.totalorder %s15, 0
      %p49 = por %p47, %p48
      %p50 = scmp.ne.s32.totalorder %s39, %s42
      %p51 = scmp.eq.s32.totalorder %s20, 1
      %p52 = por %p50, %p51
      %p53 = scmp.ne.s32.totalorder %s42, %s43
      %p54 = scmp.eq.s32.totalorder %s20, 0
      %p55 = por %p53, %p54
      %p56 = scmp.ne.s32.totalorder %s42, %s43
      %p57 = scmp.eq.s32.totalorder %s21, 1
      %p58 = por %p56, %p57
      %p60 = scmp.ne.s32.totalorder %s43, %s59
      %p61 = scmp.eq.s32.totalorder %s21, 0
      %p62 = por %p60, %p61
      %s64 = sadd.s32 %s63, 1
      %p67 = scmp.eq.s32.totalorder %s15, 1
      %p68 = scmp.ne.s32.totalorder %s63, %s65
      %p69 = scmp.eq.s32.totalorder %s15, 0
      %p70 = por %p68, %p69
      %p71 = scmp.ne.s32.totalorder %s63, %s65
      %p72 = scmp.eq.s32.totalorder %s20, 1
      %p73 = por %p71, %p72
      %p74 = scmp.ne.s32.totalorder %s65, %s66
      %p75 = scmp.eq.s32.totalorder %s20, 0
      %p76 = por %p74, %p75
      %p77 = scmp.ne.s32.totalorder %s65, %s66
      %p78 = scmp.eq.s32.totalorder %s21, 1
      %p79 = por %p77, %p78
      %p81 = scmp.ne.s32.totalorder %s66, %s80
      %p82 = scmp.eq.s32.totalorder %s21, 0
      %p83 = por %p81, %p82
      %s85 = sadd.s32 %s84, 1
      %p88 = scmp.eq.s32.totalorder %s15, 1
      %p89 = scmp.ne.s32.totalorder %s84, %s86
      %p90 = scmp.eq.s32.totalorder %s15, 0
      %p91 = por %p89, %p90
      %p92 = scmp.ne.s32.totalorder %s84, %s86
      %p93 = scmp.eq.s32.totalorder %s20, 1
      %p94 = por %p92, %p93
      %p95 = scmp.ne.s32.totalorder %s86, %s87
      %p96 = scmp.eq.s32.totalorder %s20, 0
      %p97 = por %p95, %p96
      %p98 = scmp.ne.s32.totalorder %s86, %s87
      %p99 = scmp.eq.s32.totalorder %s21, 1
      %p100 = por %p98, %p99
      %p102 = scmp.ne.s32.totalorder %s87, %s101
      %p103 = scmp.eq.s32.totalorder %s21, 0
      %p104 = por %p102, %p103
      %s105 = ssub.s32 %s22, %s34
      %s106 = ssub.s32 %s23, %s30
      %s107 = sor.u32 %s105, %s106
      %p108 = scmp.eq.s32.totalorder %s107, 0
      %s110 = sadd.s32 %s109, 1
      %s111 = scalar_select %p108, %s109, %s110
      %p114 = pneg %p108
      %p115 = scmp.eq.s32.totalorder %s15, 1
      %p116 = por %p114, %p115
      %p117 = scmp.ne.s32.totalorder %s109, %s112
      %p118 = scmp.eq.s32.totalorder %s15, 0
      %p119 = por %p117, %p118
      %p120 = scmp.ne.s32.totalorder %s109, %s112
      %p121 = scmp.eq.s32.totalorder %s20, 1
      %p122 = por %p120, %p121
      %p123 = scmp.ne.s32.totalorder %s112, %s113
      %p124 = scmp.eq.s32.totalorder %s20, 0
      %p125 = por %p123, %p124
      %p126 = scmp.ne.s32.totalorder %s112, %s113
      %p127 = scmp.eq.s32.totalorder %s21, 1
      %p128 = por %p126, %p127
      %p130 = scmp.ne.s32.totalorder %s113, %s129
      %p131 = scmp.eq.s32.totalorder %s21, 0
      %p132 = por %p130, %p131
      %p133 = scmp.le.s32.totalorder 1, %s15
      %p134 = scmp.lt.s32.totalorder %s15, 3
      %p135 = pnand %p133, %p134
      %p136 = pneg %p135
      // Predicated region
      $region9: #{tpu_custom_call.1} parent=5 // pred_check
        _
      $region10: #{tpu_custom_call.1} parent=5 // pred_check_branch
        %138 = sbr.rel (%p135) target = $region12
      $region11: #{tpu_custom_call.1} parent=5 // pred_region
        %s139 = ssub.s32 %s15, 1
        // Predicated region
        $region13: #{tpu_custom_call.1} parent=11 // pred_check
          %p140 = pneg %p76
        $region14: #{tpu_custom_call.1} parent=11 // pred_check_branch
          %142 = sbr.rel (%p140) target = $region16
        $region15: #{tpu_custom_call.1} parent=11 // pred_region
          _
        $region16: #{tpu_custom_call.1} parent=11 // pred_fallthru
          _
        // Predicated region
        $region17: #{tpu_custom_call.1} parent=11 // pred_check
          %p143 = pneg %p97
        $region18: #{tpu_custom_call.1} parent=11 // pred_check_branch
          %145 = sbr.rel (%p143) target = $region20
        $region19: #{tpu_custom_call.1} parent=11 // pred_region
          _
        $region20: #{tpu_custom_call.1} parent=11 // pred_fallthru
          _
      $region12: #{tpu_custom_call.1} parent=5 // pred_fallthru
        _
      %p146 = scmp.lt.s32.totalorder %s15, 2
      // Predicated region
      $region21: #{tpu_custom_call.1} parent=5 // pred_check
        %p147 = pneg %p146
      $region22: #{tpu_custom_call.1} parent=5 // pred_check_branch
        %149 = sbr.rel (%p147) target = $region24
      $region23: #{tpu_custom_call.1} parent=5 // pred_region
        // Predicated region
        $region25: #{tpu_custom_call.1} parent=23 // pred_check
          %p150 = pneg %p49
        $region26: #{tpu_custom_call.1} parent=23 // pred_check_branch
          %152 = sbr.rel (%p150) target = $region28
        $region27: #{tpu_custom_call.1} parent=23 // pred_region
          %s153 = sand.u32 %s39, 1
          %s154 = scalar_lea.sflag [#allocation3], %s153
          %s155 = sand.u32 %s39, 1
          %s156 = smul.addr %s155, 256
          %s157 = scalar_lea.vmem [#allocation2], %s156
          %s158 = smul.u32 2, %s23
          %160 = vsyncadd %s154, 0
          %s161 = smul.addr %s22, 32
          %s162 = sadd.s32 %s158, %s161
          %s163 = smul.addr %s162, 8
          %s164 = scalar_lea.hbm %s0, %s163
          %s165 = sshll.u32 %s164, 4
          %s166 = int_to_ptr.hbm [resolvable:$true] %s165
          %s167 = sshll.u32 %s157, 4
          %s168 = int_to_ptr.vmem [resolvable:$true] %s167
          %173 = dma.hbm_to_vmem [thread:$0]  %s166, 4096, %s168, %s154, 256, 256, 16
        $region28: #{tpu_custom_call.1} parent=23 // pred_fallthru
          _
      $region24: #{tpu_custom_call.1} parent=5 // pred_fallthru
        _
      %p174 = scmp.le.s32.totalorder 1, %s15
      %p175 = scmp.lt.s32.totalorder %s15, 3
      %p176 = pnand %p174, %p175
      %p177 = pneg %p176
      // Predicated region
      $region29: #{tpu_custom_call.1} parent=5 // pred_check
        _
      $region30: #{tpu_custom_call.1} parent=5 // pred_check_branch
        %179 = sbr.rel (%p176) target = $region32
      $region31: #{tpu_custom_call.1} parent=5 // pred_region
        %s180 = ssub.s32 %s15, 1
        %s181 = sand.u32 %s42, 1
        %s182 = scalar_lea.sflag [#allocation3], %s181
        %s183 = sand.u32 %s42, 1
        %s184 = smul.addr %s183, 256
        %s185 = scalar_lea.vmem [#allocation2], %s184
        // Predicated region
        $region33: #{tpu_custom_call.1} parent=31 // pred_check
          %p186 = pneg %p55
        $region34: #{tpu_custom_call.1} parent=31 // pred_check_branch
          %188 = sbr.rel (%p186) target = $region36
        $region35: #{tpu_custom_call.1} parent=31 // pred_region
          %190 = dma.done %s182, 4096
        $region36: #{tpu_custom_call.1} parent=31 // pred_fallthru
          _
        %s191 = sand.u32 %s42, 1
        %s192 = scalar_lea.sflag [#allocation3], %s191
        %s193 = sand.u32 %s42, 1
        %s194 = smul.addr %s193, 256
        %s195 = scalar_lea.vmem [#allocation2], %s194
        %p196 = pneg %p55
        %p197 = pneg %p52
        %p198 = pneg %p76
        %p199 = pneg %p73
        %p200 = pneg %p97
        %p201 = pneg %p94
        %p202 = pneg %p125
        %p203 = pneg %p122
        %s204 = sand.u32 %s112, 1
        %s205 = scalar_lea.sflag [#allocation4], %s204
        %s206 = sand.u32 %s112, 1
        %s207 = smul.addr %s206, 256
        %s208 = scalar_lea.vmem [#allocation5], %s207
        %s209 = smul.u32 2, %s25
        %s210 = smul.u32 2, %s25
        %v211 = vld [vmem:[%s185] sm:$0xff]
        %v212 = vld [vmem:[%s185 + $0x8] sm:$0xff]
        %v213 = vld [vmem:[%s185 + $0x10] sm:$0xff]
        %v214 = vld [vmem:[%s185 + $0x18] sm:$0xff]
        %v215 = vld [vmem:[%s185 + $0x20] sm:$0xff]
        %v216 = vld [vmem:[%s185 + $0x28] sm:$0xff]
        %v217 = vld [vmem:[%s185 + $0x30] sm:$0xff]
        %v218 = vld [vmem:[%s185 + $0x38] sm:$0xff]
        %v219 = vld [vmem:[%s185 + $0x40] sm:$0xff]
        %v220 = vld [vmem:[%s185 + $0x48] sm:$0xff]
        %v221 = vld [vmem:[%s185 + $0x50] sm:$0xff]
        %v222 = vld [vmem:[%s185 + $0x58] sm:$0xff]
        %v223 = vld [vmem:[%s185 + $0x60] sm:$0xff]
        %v224 = vld [vmem:[%s185 + $0x68] sm:$0xff]
        %v225 = vld [vmem:[%s185 + $0x70] sm:$0xff]
        %v226 = vld [vmem:[%s185 + $0x78] sm:$0xff]
        %v227 = vld [vmem:[%s185 + $0x80] sm:$0xff]
        %v228 = vld [vmem:[%s185 + $0x88] sm:$0xff]
        %v229 = vld [vmem:[%s185 + $0x90] sm:$0xff]
        %v230 = vld [vmem:[%s185 + $0x98] sm:$0xff]
        %v231 = vld [vmem:[%s185 + $0xa0] sm:$0xff]
        %v232 = vld [vmem:[%s185 + $0xa8] sm:$0xff]
        %v233 = vld [vmem:[%s185 + $0xb0] sm:$0xff]
        %v234 = vld [vmem:[%s185 + $0xb8] sm:$0xff]
        %v235 = vld [vmem:[%s185 + $0xc0] sm:$0xff]
        %v236 = vld [vmem:[%s185 + $0xc8] sm:$0xff]
        %v237 = vld [vmem:[%s185 + $0xd0] sm:$0xff]
        %v238 = vld [vmem:[%s185 + $0xd8] sm:$0xff]
        %v239 = vld [vmem:[%s185 + $0xe0] sm:$0xff]
        %v240 = vld [vmem:[%s185 + $0xe8] sm:$0xff]
        %v241 = vld [vmem:[%s185 + $0xf0] sm:$0xff]
        %v242 = vld [vmem:[%s185 + $0xf8] sm:$0xff]
        %v243 = vmul.f32 %v211, %v211
        %v244 = vmul.f32 %v212, %v212
        %v245 = vmul.f32 %v213, %v213
        %v246 = vmul.f32 %v214, %v214
        %v247 = vmul.f32 %v215, %v215
        %v248 = vmul.f32 %v216, %v216
        %v249 = vmul.f32 %v217, %v217
        %v250 = vmul.f32 %v218, %v218
        %v251 = vmul.f32 %v219, %v219
        %v252 = vmul.f32 %v220, %v220
        %v253 = vmul.f32 %v221, %v221
        %v254 = vmul.f32 %v222, %v222
        %v255 = vmul.f32 %v223, %v223
        %v256 = vmul.f32 %v224, %v224
        %v257 = vmul.f32 %v225, %v225
        %v258 = vmul.f32 %v226, %v226
        %v259 = vmul.f32 %v227, %v227
        %v260 = vmul.f32 %v228, %v228
        %v261 = vmul.f32 %v229, %v229
        %v262 = vmul.f32 %v230, %v230
        %v263 = vmul.f32 %v231, %v231
        %v264 = vmul.f32 %v232, %v232
        %v265 = vmul.f32 %v233, %v233
        %v266 = vmul.f32 %v234, %v234
        %v267 = vmul.f32 %v235, %v235
        %v268 = vmul.f32 %v236, %v236
        %v269 = vmul.f32 %v237, %v237
        %v270 = vmul.f32 %v238, %v238
        %v271 = vmul.f32 %v239, %v239
        %v272 = vmul.f32 %v240, %v240
        %v273 = vmul.f32 %v241, %v241
        %v274 = vmul.f32 %v242, %v242
        %v275 = vld [vmem:[%s1] sm:$0xff]
        %v276 = vld [vmem:[%s1 + $0x8] sm:$0xff]
        %v277 = vld [vmem:[%s1 + $0x10] sm:$0xff]
        %v278 = vld [vmem:[%s1 + $0x18] sm:$0xff]
        %v279 = vld [vmem:[%s1 + $0x20] sm:$0xff]
        %v280 = vld [vmem:[%s1 + $0x28] sm:$0xff]
        %v281 = vld [vmem:[%s1 + $0x30] sm:$0xff]
        %v282 = vld [vmem:[%s1 + $0x38] sm:$0xff]
        %v283 = vld [vmem:[%s1 + $0x40] sm:$0xff]
        %v284 = vld [vmem:[%s1 + $0x48] sm:$0xff]
        %v285 = vld [vmem:[%s1 + $0x50] sm:$0xff]
        %v286 = vld [vmem:[%s1 + $0x58] sm:$0xff]
        %v287 = vld [vmem:[%s1 + $0x60] sm:$0xff]
        %v288 = vld [vmem:[%s1 + $0x68] sm:$0xff]
        %v289 = vld [vmem:[%s1 + $0x70] sm:$0xff]
        %v290 = vld [vmem:[%s1 + $0x78] sm:$0xff]
        %v291 = vld [vmem:[%s2] sm:$0xff]
        %v292 = vld [vmem:[%s2 + $0x8] sm:$0xff]
        %v293 = vld [vmem:[%s2 + $0x10] sm:$0xff]
        %v294 = vld [vmem:[%s2 + $0x18] sm:$0xff]
        %v295 = vld [vmem:[%s2 + $0x20] sm:$0xff]
        %v296 = vld [vmem:[%s2 + $0x28] sm:$0xff]
        %v297 = vld [vmem:[%s2 + $0x30] sm:$0xff]
        %v298 = vld [vmem:[%s2 + $0x38] sm:$0xff]
        %v299 = vld [vmem:[%s2 + $0x40] sm:$0xff]
        %v300 = vld [vmem:[%s2 + $0x48] sm:$0xff]
        %v301 = vld [vmem:[%s2 + $0x50] sm:$0xff]
        %v302 = vld [vmem:[%s2 + $0x58] sm:$0xff]
        %v303 = vld [vmem:[%s2 + $0x60] sm:$0xff]
        %v304 = vld [vmem:[%s2 + $0x68] sm:$0xff]
        %v305 = vld [vmem:[%s2 + $0x70] sm:$0xff]
        %v306 = vld [vmem:[%s2 + $0x78] sm:$0xff]
        %308 = vset.pattern.permute.xlu0 0
        %309 = vperm.xlu0 %308, %v291
        %v310 = vpop.permute.xlu0 %309
        %313 = vset.pattern.permute.xlu0 0
        %314 = vperm.xlu0 %313, %v292
        %v315 = vpop.permute.xlu0 %314
        %318 = vset.pattern.permute.xlu0 0
        %319 = vperm.xlu0 %318, %v293
        %v320 = vpop.permute.xlu0 %319
        %323 = vset.pattern.permute.xlu0 0
        %324 = vperm.xlu0 %323, %v294
        %v325 = vpop.permute.xlu0 %324
        %328 = vset.pattern.permute.xlu0 0
        %329 = vperm.xlu0 %328, %v295
        %v330 = vpop.permute.xlu0 %329
        %333 = vset.pattern.permute.xlu0 0
        %334 = vperm.xlu0 %333, %v296
        %v335 = vpop.permute.xlu0 %334
        %338 = vset.pattern.permute.xlu0 0
        %339 = vperm.xlu0 %338, %v297
        %v340 = vpop.permute.xlu0 %339
        %343 = vset.pattern.permute.xlu0 0
        %344 = vperm.xlu0 %343, %v298
        %v345 = vpop.permute.xlu0 %344
        %348 = vset.pattern.permute.xlu0 0
        %349 = vperm.xlu0 %348, %v299
        %v350 = vpop.permute.xlu0 %349
        %353 = vset.pattern.permute.xlu0 0
        %354 = vperm.xlu0 %353, %v300
        %v355 = vpop.permute.xlu0 %354
        %358 = vset.pattern.permute.xlu0 0
        %359 = vperm.xlu0 %358, %v301
        %v360 = vpop.permute.xlu0 %359
        %363 = vset.pattern.permute.xlu0 0
        %364 = vperm.xlu0 %363, %v302
        %v365 = vpop.permute.xlu0 %364
        %368 = vset.pattern.permute.xlu0 0
        %369 = vperm.xlu0 %368, %v303
        %v370 = vpop.permute.xlu0 %369
        %373 = vset.pattern.permute.xlu0 0
        %374 = vperm.xlu0 %373, %v304
        %v375 = vpop.permute.xlu0 %374
        %378 = vset.pattern.permute.xlu0 0
        %379 = vperm.xlu0 %378, %v305
        %v380 = vpop.permute.xlu0 %379
        %383 = vset.pattern.permute.xlu0 0
        %384 = vperm.xlu0 %383, %v306
        %v385 = vpop.permute.xlu0 %384
        %387 = vmatpush.msra.mxu0 %v273
        %388 = vmatpush.msra.mxu0 %v271
        %389 = vmatpush.msra.mxu0 %v269
        %390 = vmatpush.msra.mxu0 %v267
        %391 = vmatpush.msra.mxu0 %v265
        %392 = vmatpush.msra.mxu0 %v263
        %393 = vmatpush.msra.mxu0 %v261
        %394 = vmatpush.msra.mxu0 %v259
        %395 = vmatpush.msra.mxu0 %v257
        %396 = vmatpush.msra.mxu0 %v255
        %397 = vmatpush.msra.mxu0 %v253
        %398 = vmatpush.msra.mxu0 %v251
        %399 = vmatpush.msra.mxu0 %v249
        %400 = vmatpush.msra.mxu0 %v247
        %401 = vmatpush.msra.mxu0 %v245
        %402 = vmatpush.msra.mxu0 %v243
        %403 = vmatmul.f32.gmra.mxu0 %v275
        %v404 = vpop.f32.mrf.mxu0
        %v405 = vadd.f32 %v310, %v404
        %406 = vmatmul.f32.gmra.mxu0 %v276
        %v407 = vpop.f32.mrf.mxu0
        %v408 = vadd.f32 %v315, %v407
        %409 = vmatmul.f32.gmra.mxu0 %v277
        %v410 = vpop.f32.mrf.mxu0
        %v411 = vadd.f32 %v320, %v410
        %412 = vmatmul.f32.gmra.mxu0 %v278
        %v413 = vpop.f32.mrf.mxu0
        %v414 = vadd.f32 %v325, %v413
        %415 = vmatmul.f32.gmra.mxu0 %v279
        %v416 = vpop.f32.mrf.mxu0
        %v417 = vadd.f32 %v330, %v416
        %418 = vmatmul.f32.gmra.mxu0 %v280
        %v419 = vpop.f32.mrf.mxu0
        %v420 = vadd.f32 %v335, %v419
        %421 = vmatmul.f32.gmra.mxu0 %v281
        %v422 = vpop.f32.mrf.mxu0
        %v423 = vadd.f32 %v340, %v422
        %424 = vmatmul.f32.gmra.mxu0 %v282
        %v425 = vpop.f32.mrf.mxu0
        %v426 = vadd.f32 %v345, %v425
        %427 = vmatmul.f32.gmra.mxu0 %v283
        %v428 = vpop.f32.mrf.mxu0
        %v429 = vadd.f32 %v350, %v428
        %430 = vmatmul.f32.gmra.mxu0 %v284
        %v431 = vpop.f32.mrf.mxu0
        %v432 = vadd.f32 %v355, %v431
        %433 = vmatmul.f32.gmra.mxu0 %v285
        %v434 = vpop.f32.mrf.mxu0
        %v435 = vadd.f32 %v360, %v434
        %436 = vmatmul.f32.gmra.mxu0 %v286
        %v437 = vpop.f32.mrf.mxu0
        %v438 = vadd.f32 %v365, %v437
        %439 = vmatmul.f32.gmra.mxu0 %v287
        %v440 = vpop.f32.mrf.mxu0
        %v441 = vadd.f32 %v370, %v440
        %442 = vmatmul.f32.gmra.mxu0 %v288
        %v443 = vpop.f32.mrf.mxu0
        %v444 = vadd.f32 %v375, %v443
        %445 = vmatmul.f32.gmra.mxu0 %v289
        %v446 = vpop.f32.mrf.mxu0
        %v447 = vadd.f32 %v380, %v446
        %448 = vmatmul.f32.gmra.mxu0 %v290
        %v449 = vpop.f32.mrf.mxu0
        %v450 = vadd.f32 %v385, %v449
        %451 = vdwg.mxu0
        %452 = vmatpush.msra.mxu0 %v274
        %453 = vmatpush.msra.mxu0 %v272
        %454 = vmatpush.msra.mxu0 %v270
        %455 = vmatpush.msra.mxu0 %v268
        %456 = vmatpush.msra.mxu0 %v266
        %457 = vmatpush.msra.mxu0 %v264
        %458 = vmatpush.msra.mxu0 %v262
        %459 = vmatpush.msra.mxu0 %v260
        %460 = vmatpush.msra.mxu0 %v258
        %461 = vmatpush.msra.mxu0 %v256
        %462 = vmatpush.msra.mxu0 %v254
        %463 = vmatpush.msra.mxu0 %v252
        %464 = vmatpush.msra.mxu0 %v250
        %465 = vmatpush.msra.mxu0 %v248
        %466 = vmatpush.msra.mxu0 %v246
        %467 = vmatpush.msra.mxu0 %v244
        %468 = vmatmul.f32.gmra.mxu0 %v275
        %v469 = vpop.f32.mrf.mxu0
        %v470 = vadd.f32 %v310, %v469
        %471 = vmatmul.f32.gmra.mxu0 %v276
        %v472 = vpop.f32.mrf.mxu0
        %v473 = vadd.f32 %v315, %v472
        %474 = vmatmul.f32.gmra.mxu0 %v277
        %v475 = vpop.f32.mrf.mxu0
        %v476 = vadd.f32 %v320, %v475
        %477 = vmatmul.f32.gmra.mxu0 %v278
        %v478 = vpop.f32.mrf.mxu0
        %v479 = vadd.f32 %v325, %v478
        %480 = vmatmul.f32.gmra.mxu0 %v279
        %v481 = vpop.f32.mrf.mxu0
        %v482 = vadd.f32 %v330, %v481
        %483 = vmatmul.f32.gmra.mxu0 %v280
        %v484 = vpop.f32.mrf.mxu0
        %v485 = vadd.f32 %v335, %v484
        %486 = vmatmul.f32.gmra.mxu0 %v281
        %v487 = vpop.f32.mrf.mxu0
        %v488 = vadd.f32 %v340, %v487
        %489 = vmatmul.f32.gmra.mxu0 %v282
        %v490 = vpop.f32.mrf.mxu0
        %v491 = vadd.f32 %v345, %v490
        %492 = vmatmul.f32.gmra.mxu0 %v283
        %v493 = vpop.f32.mrf.mxu0
        %v494 = vadd.f32 %v350, %v493
        %495 = vmatmul.f32.gmra.mxu0 %v284
        %v496 = vpop.f32.mrf.mxu0
        %v497 = vadd.f32 %v355, %v496
        %498 = vmatmul.f32.gmra.mxu0 %v285
        %v499 = vpop.f32.mrf.mxu0
        %v500 = vadd.f32 %v360, %v499
        %501 = vmatmul.f32.gmra.mxu0 %v286
        %v502 = vpop.f32.mrf.mxu0
        %v503 = vadd.f32 %v365, %v502
        %504 = vmatmul.f32.gmra.mxu0 %v287
        %v505 = vpop.f32.mrf.mxu0
        %v506 = vadd.f32 %v370, %v505
        %507 = vmatmul.f32.gmra.mxu0 %v288
        %v508 = vpop.f32.mrf.mxu0
        %v509 = vadd.f32 %v375, %v508
        %510 = vmatmul.f32.gmra.mxu0 %v289
        %v511 = vpop.f32.mrf.mxu0
        %v512 = vadd.f32 %v380, %v511
        %513 = vmatmul.f32.gmra.mxu0 %v290
        %v514 = vpop.f32.mrf.mxu0
        %v515 = vadd.f32 %v385, %v514
        %516 = vdwg.mxu0
        %v517 = vrsqrt.pop %v405
        %v518 = vmul.f32 %v517, %v405
        %v519 = vmul.f32 %v518, %v517
        %v520 = vmul.f32 0.5, %v519
        %v521 = vsub.f32 1.5, %v520
        %v522 = vmul.f32 %v517, %v521
        %vm523 = vweird.f32 %v405
        %vm524 = vweird.f32 %v517
        %vm525 = vmor %vm523, %vm524
        %v526 = vsel %vm525, %v517, %v522
        %v527 = vrsqrt.pop %v470
        %v528 = vmul.f32 %v527, %v470
        %v529 = vmul.f32 %v528, %v527
        %v530 = vmul.f32 0.5, %v529
        %v531 = vsub.f32 1.5, %v530
        %v532 = vmul.f32 %v527, %v531
        %vm533 = vweird.f32 %v470
        %vm534 = vweird.f32 %v527
        %vm535 = vmor %vm533, %vm534
        %v536 = vsel %vm535, %v527, %v532
        %v537 = vrsqrt.pop %v408
        %v538 = vmul.f32 %v537, %v408
        %v539 = vmul.f32 %v538, %v537
        %v540 = vmul.f32 0.5, %v539
        %v541 = vsub.f32 1.5, %v540
        %v542 = vmul.f32 %v537, %v541
        %vm543 = vweird.f32 %v408
        %vm544 = vweird.f32 %v537
        %vm545 = vmor %vm543, %vm544
        %v546 = vsel %vm545, %v537, %v542
        %v547 = vrsqrt.pop %v473
        %v548 = vmul.f32 %v547, %v473
        %v549 = vmul.f32 %v548, %v547
        %v550 = vmul.f32 0.5, %v549
        %v551 = vsub.f32 1.5, %v550
        %v552 = vmul.f32 %v547, %v551
        %vm553 = vweird.f32 %v473
        %vm554 = vweird.f32 %v547
        %vm555 = vmor %vm553, %vm554
        %v556 = vsel %vm555, %v547, %v552
        %v557 = vrsqrt.pop %v411
        %v558 = vmul.f32 %v557, %v411
        %v559 = vmul.f32 %v558, %v557
        %v560 = vmul.f32 0.5, %v559
        %v561 = vsub.f32 1.5, %v560
        %v562 = vmul.f32 %v557, %v561
        %vm563 = vweird.f32 %v411
        %vm564 = vweird.f32 %v557
        %vm565 = vmor %vm563, %vm564
        %v566 = vsel %vm565, %v557, %v562
        %v567 = vrsqrt.pop %v476
        %v568 = vmul.f32 %v567, %v476
        %v569 = vmul.f32 %v568, %v567
        %v570 = vmul.f32 0.5, %v569
        %v571 = vsub.f32 1.5, %v570
        %v572 = vmul.f32 %v567, %v571
        %vm573 = vweird.f32 %v476
        %vm574 = vweird.f32 %v567
        %vm575 = vmor %vm573, %vm574
        %v576 = vsel %vm575, %v567, %v572
        %v577 = vrsqrt.pop %v414
        %v578 = vmul.f32 %v577, %v414
        %v579 = vmul.f32 %v578, %v577
        %v580 = vmul.f32 0.5, %v579
        %v581 = vsub.f32 1.5, %v580
        %v582 = vmul.f32 %v577, %v581
        %vm583 = vweird.f32 %v414
        %vm584 = vweird.f32 %v577
        %vm585 = vmor %vm583, %vm584
        %v586 = vsel %vm585, %v577, %v582
        %v587 = vrsqrt.pop %v479
        %v588 = vmul.f32 %v587, %v479
        %v589 = vmul.f32 %v588, %v587
        %v590 = vmul.f32 0.5, %v589
        %v591 = vsub.f32 1.5, %v590
        %v592 = vmul.f32 %v587, %v591
        %vm593 = vweird.f32 %v479
        %vm594 = vweird.f32 %v587
        %vm595 = vmor %vm593, %vm594
        %v596 = vsel %vm595, %v587, %v592
        %v597 = vrsqrt.pop %v417
        %v598 = vmul.f32 %v597, %v417
        %v599 = vmul.f32 %v598, %v597
        %v600 = vmul.f32 0.5, %v599
        %v601 = vsub.f32 1.5, %v600
        %v602 = vmul.f32 %v597, %v601
        %vm603 = vweird.f32 %v417
        %vm604 = vweird.f32 %v597
        %vm605 = vmor %vm603, %vm604
        %v606 = vsel %vm605, %v597, %v602
        %v607 = vrsqrt.pop %v482
        %v608 = vmul.f32 %v607, %v482
        %v609 = vmul.f32 %v608, %v607
        %v610 = vmul.f32 0.5, %v609
        %v611 = vsub.f32 1.5, %v610
        %v612 = vmul.f32 %v607, %v611
        %vm613 = vweird.f32 %v482
        %vm614 = vweird.f32 %v607
        %vm615 = vmor %vm613, %vm614
        %v616 = vsel %vm615, %v607, %v612
        %v617 = vrsqrt.pop %v420
        %v618 = vmul.f32 %v617, %v420
        %v619 = vmul.f32 %v618, %v617
        %v620 = vmul.f32 0.5, %v619
        %v621 = vsub.f32 1.5, %v620
        %v622 = vmul.f32 %v617, %v621
        %vm623 = vweird.f32 %v420
        %vm624 = vweird.f32 %v617
        %vm625 = vmor %vm623, %vm624
        %v626 = vsel %vm625, %v617, %v622
        %v627 = vrsqrt.pop %v485
        %v628 = vmul.f32 %v627, %v485
        %v629 = vmul.f32 %v628, %v627
        %v630 = vmul.f32 0.5, %v629
        %v631 = vsub.f32 1.5, %v630
        %v632 = vmul.f32 %v627, %v631
        %vm633 = vweird.f32 %v485
        %vm634 = vweird.f32 %v627
        %vm635 = vmor %vm633, %vm634
        %v636 = vsel %vm635, %v627, %v632
        %v637 = vrsqrt.pop %v423
        %v638 = vmul.f32 %v637, %v423
        %v639 = vmul.f32 %v638, %v637
        %v640 = vmul.f32 0.5, %v639
        %v641 = vsub.f32 1.5, %v640
        %v642 = vmul.f32 %v637, %v641
        %vm643 = vweird.f32 %v423
        %vm644 = vweird.f32 %v637
        %vm645 = vmor %vm643, %vm644
        %v646 = vsel %vm645, %v637, %v642
        %v647 = vrsqrt.pop %v488
        %v648 = vmul.f32 %v647, %v488
        %v649 = vmul.f32 %v648, %v647
        %v650 = vmul.f32 0.5, %v649
        %v651 = vsub.f32 1.5, %v650
        %v652 = vmul.f32 %v647, %v651
        %vm653 = vweird.f32 %v488
        %vm654 = vweird.f32 %v647
        %vm655 = vmor %vm653, %vm654
        %v656 = vsel %vm655, %v647, %v652
        %v657 = vrsqrt.pop %v426
        %v658 = vmul.f32 %v657, %v426
        %v659 = vmul.f32 %v658, %v657
        %v660 = vmul.f32 0.5, %v659
        %v661 = vsub.f32 1.5, %v660
        %v662 = vmul.f32 %v657, %v661
        %vm663 = vweird.f32 %v426
        %vm664 = vweird.f32 %v657
        %vm665 = vmor %vm663, %vm664
        %v666 = vsel %vm665, %v657, %v662
        %v667 = vrsqrt.pop %v491
        %v668 = vmul.f32 %v667, %v491
        %v669 = vmul.f32 %v668, %v667
        %v670 = vmul.f32 0.5, %v669
        %v671 = vsub.f32 1.5, %v670
        %v672 = vmul.f32 %v667, %v671
        %vm673 = vweird.f32 %v491
        %vm674 = vweird.f32 %v667
        %vm675 = vmor %vm673, %vm674
        %v676 = vsel %vm675, %v667, %v672
        %v677 = vrsqrt.pop %v429
        %v678 = vmul.f32 %v677, %v429
        %v679 = vmul.f32 %v678, %v677
        %v680 = vmul.f32 0.5, %v679
        %v681 = vsub.f32 1.5, %v680
        %v682 = vmul.f32 %v677, %v681
        %vm683 = vweird.f32 %v429
        %vm684 = vweird.f32 %v677
        %vm685 = vmor %vm683, %vm684
        %v686 = vsel %vm685, %v677, %v682
        %v687 = vrsqrt.pop %v494
        %v688 = vmul.f32 %v687, %v494
        %v689 = vmul.f32 %v688, %v687
        %v690 = vmul.f32 0.5, %v689
        %v691 = vsub.f32 1.5, %v690
        %v692 = vmul.f32 %v687, %v691
        %vm693 = vweird.f32 %v494
        %vm694 = vweird.f32 %v687
        %vm695 = vmor %vm693, %vm694
        %v696 = vsel %vm695, %v687, %v692
        %v697 = vrsqrt.pop %v432
        %v698 = vmul.f32 %v697, %v432
        %v699 = vmul.f32 %v698, %v697
        %v700 = vmul.f32 0.5, %v699
        %v701 = vsub.f32 1.5, %v700
        %v702 = vmul.f32 %v697, %v701
        %vm703 = vweird.f32 %v432
        %vm704 = vweird.f32 %v697
        %vm705 = vmor %vm703, %vm704
        %v706 = vsel %vm705, %v697, %v702
        %v707 = vrsqrt.pop %v497
        %v708 = vmul.f32 %v707, %v497
        %v709 = vmul.f32 %v708, %v707
        %v710 = vmul.f32 0.5, %v709
        %v711 = vsub.f32 1.5, %v710
        %v712 = vmul.f32 %v707, %v711
        %vm713 = vweird.f32 %v497
        %vm714 = vweird.f32 %v707
        %vm715 = vmor %vm713, %vm714
        %v716 = vsel %vm715, %v707, %v712
        %v717 = vrsqrt.pop %v435
        %v718 = vmul.f32 %v717, %v435
        %v719 = vmul.f32 %v718, %v717
        %v720 = vmul.f32 0.5, %v719
        %v721 = vsub.f32 1.5, %v720
        %v722 = vmul.f32 %v717, %v721
        %vm723 = vweird.f32 %v435
        %vm724 = vweird.f32 %v717
        %vm725 = vmor %vm723, %vm724
        %v726 = vsel %vm725, %v717, %v722
        %v727 = vrsqrt.pop %v500
        %v728 = vmul.f32 %v727, %v500
        %v729 = vmul.f32 %v728, %v727
        %v730 = vmul.f32 0.5, %v729
        %v731 = vsub.f32 1.5, %v730
        %v732 = vmul.f32 %v727, %v731
        %vm733 = vweird.f32 %v500
        %vm734 = vweird.f32 %v727
        %vm735 = vmor %vm733, %vm734
        %v736 = vsel %vm735, %v727, %v732
        %v737 = vrsqrt.pop %v438
        %v738 = vmul.f32 %v737, %v438
        %v739 = vmul.f32 %v738, %v737
        %v740 = vmul.f32 0.5, %v739
        %v741 = vsub.f32 1.5, %v740
        %v742 = vmul.f32 %v737, %v741
        %vm743 = vweird.f32 %v438
        %vm744 = vweird.f32 %v737
        %vm745 = vmor %vm743, %vm744
        %v746 = vsel %vm745, %v737, %v742
        %v747 = vrsqrt.pop %v503
        %v748 = vmul.f32 %v747, %v503
        %v749 = vmul.f32 %v748, %v747
        %v750 = vmul.f32 0.5, %v749
        %v751 = vsub.f32 1.5, %v750
        %v752 = vmul.f32 %v747, %v751
        %vm753 = vweird.f32 %v503
        %vm754 = vweird.f32 %v747
        %vm755 = vmor %vm753, %vm754
        %v756 = vsel %vm755, %v747, %v752
        %v757 = vrsqrt.pop %v441
        %v758 = vmul.f32 %v757, %v441
        %v759 = vmul.f32 %v758, %v757
        %v760 = vmul.f32 0.5, %v759
        %v761 = vsub.f32 1.5, %v760
        %v762 = vmul.f32 %v757, %v761
        %vm763 = vweird.f32 %v441
        %vm764 = vweird.f32 %v757
        %vm765 = vmor %vm763, %vm764
        %v766 = vsel %vm765, %v757, %v762
        %v767 = vrsqrt.pop %v506
        %v768 = vmul.f32 %v767, %v506
        %v769 = vmul.f32 %v768, %v767
        %v770 = vmul.f32 0.5, %v769
        %v771 = vsub.f32 1.5, %v770
        %v772 = vmul.f32 %v767, %v771
        %vm773 = vweird.f32 %v506
        %vm774 = vweird.f32 %v767
        %vm775 = vmor %vm773, %vm774
        %v776 = vsel %vm775, %v767, %v772
        %v777 = vrsqrt.pop %v444
        %v778 = vmul.f32 %v777, %v444
        %v779 = vmul.f32 %v778, %v777
        %v780 = vmul.f32 0.5, %v779
        %v781 = vsub.f32 1.5, %v780
        %v782 = vmul.f32 %v777, %v781
        %vm783 = vweird.f32 %v444
        %vm784 = vweird.f32 %v777
        %vm785 = vmor %vm783, %vm784
        %v786 = vsel %vm785, %v777, %v782
        %v787 = vrsqrt.pop %v509
        %v788 = vmul.f32 %v787, %v509
        %v789 = vmul.f32 %v788, %v787
        %v790 = vmul.f32 0.5, %v789
        %v791 = vsub.f32 1.5, %v790
        %v792 = vmul.f32 %v787, %v791
        %vm793 = vweird.f32 %v509
        %vm794 = vweird.f32 %v787
        %vm795 = vmor %vm793, %vm794
        %v796 = vsel %vm795, %v787, %v792
        %v797 = vrsqrt.pop %v447
        %v798 = vmul.f32 %v797, %v447
        %v799 = vmul.f32 %v798, %v797
        %v800 = vmul.f32 0.5, %v799
        %v801 = vsub.f32 1.5, %v800
        %v802 = vmul.f32 %v797, %v801
        %vm803 = vweird.f32 %v447
        %vm804 = vweird.f32 %v797
        %vm805 = vmor %vm803, %vm804
        %v806 = vsel %vm805, %v797, %v802
        %v807 = vrsqrt.pop %v512
        %v808 = vmul.f32 %v807, %v512
        %v809 = vmul.f32 %v808, %v807
        %v810 = vmul.f32 0.5, %v809
        %v811 = vsub.f32 1.5, %v810
        %v812 = vmul.f32 %v807, %v811
        %vm813 = vweird.f32 %v512
        %vm814 = vweird.f32 %v807
        %vm815 = vmor %vm813, %vm814
        %v816 = vsel %vm815, %v807, %v812
        %v817 = vrsqrt.pop %v450
        %v818 = vmul.f32 %v817, %v450
        %v819 = vmul.f32 %v818, %v817
        %v820 = vmul.f32 0.5, %v819
        %v821 = vsub.f32 1.5, %v820
        %v822 = vmul.f32 %v817, %v821
        %vm823 = vweird.f32 %v450
        %vm824 = vweird.f32 %v817
        %vm825 = vmor %vm823, %vm824
        %v826 = vsel %vm825, %v817, %v822
        %v827 = vrsqrt.pop %v515
        %v828 = vmul.f32 %v827, %v515
        %v829 = vmul.f32 %v828, %v827
        %v830 = vmul.f32 0.5, %v829
        %v831 = vsub.f32 1.5, %v830
        %v832 = vmul.f32 %v827, %v831
        %vm833 = vweird.f32 %v515
        %vm834 = vweird.f32 %v827
        %vm835 = vmor %vm833, %vm834
        %v836 = vsel %vm835, %v827, %v832
        %v837 = vmul.f32 %v211, %v526
        %v838 = vmul.f32 %v212, %v536
        %v839 = vmul.f32 %v213, %v546
        %v840 = vmul.f32 %v214, %v556
        %v841 = vmul.f32 %v215, %v566
        %v842 = vmul.f32 %v216, %v576
        %v843 = vmul.f32 %v217, %v586
        %v844 = vmul.f32 %v218, %v596
        %v845 = vmul.f32 %v219, %v606
        %v846 = vmul.f32 %v220, %v616
        %v847 = vmul.f32 %v221, %v626
        %v848 = vmul.f32 %v222, %v636
        %v849 = vmul.f32 %v223, %v646
        %v850 = vmul.f32 %v224, %v656
        %v851 = vmul.f32 %v225, %v666
        %v852 = vmul.f32 %v226, %v676
        %v853 = vmul.f32 %v227, %v686
        %v854 = vmul.f32 %v228, %v696
        %v855 = vmul.f32 %v229, %v706
        %v856 = vmul.f32 %v230, %v716
        %v857 = vmul.f32 %v231, %v726
        %v858 = vmul.f32 %v232, %v736
        %v859 = vmul.f32 %v233, %v746
        %v860 = vmul.f32 %v234, %v756
        %v861 = vmul.f32 %v235, %v766
        %v862 = vmul.f32 %v236, %v776
        %v863 = vmul.f32 %v237, %v786
        %v864 = vmul.f32 %v238, %v796
        %v865 = vmul.f32 %v239, %v806
        %v866 = vmul.f32 %v240, %v816
        %v867 = vmul.f32 %v241, %v826
        %v868 = vmul.f32 %v242, %v836
        %869 = vst [vmem:[%s208] sm:$0xff] %v837
        %870 = vst [vmem:[%s208 + $0x8] sm:$0xff] %v838
        %871 = vst [vmem:[%s208 + $0x10] sm:$0xff] %v839
        %872 = vst [vmem:[%s208 + $0x18] sm:$0xff] %v840
        %873 = vst [vmem:[%s208 + $0x20] sm:$0xff] %v841
        %874 = vst [vmem:[%s208 + $0x28] sm:$0xff] %v842
        %875 = vst [vmem:[%s208 + $0x30] sm:$0xff] %v843
        %876 = vst [vmem:[%s208 + $0x38] sm:$0xff] %v844
        %877 = vst [vmem:[%s208 + $0x40] sm:$0xff] %v845
        %878 = vst [vmem:[%s208 + $0x48] sm:$0xff] %v846
        %879 = vst [vmem:[%s208 + $0x50] sm:$0xff] %v847
        %880 = vst [vmem:[%s208 + $0x58] sm:$0xff] %v848
        %881 = vst [vmem:[%s208 + $0x60] sm:$0xff] %v849
        %882 = vst [vmem:[%s208 + $0x68] sm:$0xff] %v850
        %883 = vst [vmem:[%s208 + $0x70] sm:$0xff] %v851
        %884 = vst [vmem:[%s208 + $0x78] sm:$0xff] %v852
        %885 = vst [vmem:[%s208 + $0x80] sm:$0xff] %v853
        %886 = vst [vmem:[%s208 + $0x88] sm:$0xff] %v854
        %887 = vst [vmem:[%s208 + $0x90] sm:$0xff] %v855
        %888 = vst [vmem:[%s208 + $0x98] sm:$0xff] %v856
        %889 = vst [vmem:[%s208 + $0xa0] sm:$0xff] %v857
        %890 = vst [vmem:[%s208 + $0xa8] sm:$0xff] %v858
        %891 = vst [vmem:[%s208 + $0xb0] sm:$0xff] %v859
        %892 = vst [vmem:[%s208 + $0xb8] sm:$0xff] %v860
        %893 = vst [vmem:[%s208 + $0xc0] sm:$0xff] %v861
        %894 = vst [vmem:[%s208 + $0xc8] sm:$0xff] %v862
        %895 = vst [vmem:[%s208 + $0xd0] sm:$0xff] %v863
        %896 = vst [vmem:[%s208 + $0xd8] sm:$0xff] %v864
        %897 = vst [vmem:[%s208 + $0xe0] sm:$0xff] %v865
        %898 = vst [vmem:[%s208 + $0xe8] sm:$0xff] %v866
        %899 = vst [vmem:[%s208 + $0xf0] sm:$0xff] %v867
        %900 = vst [vmem:[%s208 + $0xf8] sm:$0xff] %v868
        %s901 = sand.u32 %s112, 1
        %s902 = scalar_lea.sflag [#allocation4], %s901
        %s903 = sand.u32 %s112, 1
        %s904 = smul.addr %s903, 256
        %s905 = scalar_lea.vmem [#allocation5], %s904
        // Predicated region
        $region37: #{tpu_custom_call.1} parent=31 // pred_check
          %p906 = pneg %p122
        $region38: #{tpu_custom_call.1} parent=31 // pred_check_branch
          %908 = sbr.rel (%p906) target = $region40
        $region39: #{tpu_custom_call.1} parent=31 // pred_region
          %s909 = smul.u32 2, %s25
          %911 = vsyncadd %s902, 0
          %s912 = smul.addr %s24, 32
          %s913 = sadd.s32 %s909, %s912
          %s914 = smul.addr %s913, 8
          %s915 = scalar_lea.hbm %s3, %s914
          %s916 = sshll.u32 %s905, 4
          %s917 = int_to_ptr.vmem [resolvable:$true] %s916
          %s918 = sshll.u32 %s915, 4
          %s919 = int_to_ptr.hbm [resolvable:$true] %s918
          %924 = dma.vmem_to_hbm [thread:$0]  %s917, 4096, %s919, %s902, 256, 256, 16
        $region40: #{tpu_custom_call.1} parent=31 // pred_fallthru
          _
      $region32: #{tpu_custom_call.1} parent=5 // pred_fallthru
        _
      %p925 = scmp.le.s32.totalorder 2, %s15
      // Predicated region
      $region41: #{tpu_custom_call.1} parent=5 // pred_check
        %p926 = pneg %p925
      $region42: #{tpu_custom_call.1} parent=5 // pred_check_branch
        %928 = sbr.rel (%p926) target = $region44
      $region43: #{tpu_custom_call.1} parent=5 // pred_region
        %s929 = ssub.s32 %s15, 2
        // Predicated region
        $region45: #{tpu_custom_call.1} parent=43 // pred_check
          %p930 = pneg %p128
        $region46: #{tpu_custom_call.1} parent=43 // pred_check_branch
          %932 = sbr.rel (%p930) target = $region48
        $region47: #{tpu_custom_call.1} parent=43 // pred_region
          %s933 = sand.u32 %s113, 1
          %s934 = scalar_lea.sflag [#allocation4], %s933
          %s935 = sand.u32 %s113, 1
          %s936 = smul.addr %s935, 256
          %s937 = scalar_lea.vmem [#allocation5], %s936
          %939 = dma.done %s934, 4096
        $region48: #{tpu_custom_call.1} parent=43 // pred_fallthru
          _
      $region44: #{tpu_custom_call.1} parent=5 // pred_fallthru
        _
    $region6: #{tpu_custom_call.1} parent=1 // loop_footer
      %s19 = sadd.s32 1, %s15
    $region7: #{tpu_custom_call.1} parent=1 // loop_footer_branch
      %14 = sbr.rel target = $region3
    $region8: #{tpu_custom_call.1} parent=1 // loop_exit
      _
    %940 = vsyncpa [#allocation3], 1
    %s941 = scalar_lea.sflag [#allocation3], 1
    %942 = vsyncpa %s941, 1
    %943 = vsyncpa [#allocation4], 1
    %s944 = scalar_lea.sflag [#allocation4], 1
    %945 = vsyncpa %s944, 1

</llo_original>
